<compile_context>
chip_gen: v5e
topology: v5e:2x2
jax: 0.10.0
libtpu: 0.0.40
codegen_flags: <defaults>
</compile_context>

<pallas_src>
import math

import jax
import jax.numpy as jnp
from jax.experimental import pallas as pl
from jax.experimental.pallas import tpu as pltpu


def _round_up(x, m):
    return ((x + m - 1) // m) * m


def _timestep_embedder_kernel(t_ref, freqs_ref, w1c_ref, w1s_ref, b1_ref,
                              w2_ref, b2_ref, out_ref):
    # t_ref:     (tm, 1)      f32   block of timesteps
    # freqs_ref: (1, half)    f32
    # w1c_ref:   (half, Hp)   bf16  rows of W1 multiplied by cos(args)
    # w1s_ref:   (half, Hp)   bf16  rows of W1 multiplied by sin(args)
    # b1_ref:    (1, Hp)      bf16
    # w2_ref:    (Hp, Hp)     bf16
    # b2_ref:    (1, Hp)      bf16
    # out_ref:   (tm, Hp)     f32
    args = t_ref[...] * freqs_ref[...]            # (tm, half) f32 phases
    cos_a = jnp.cos(args)
    sin_a = jnp.sin(args)

    # First linear without the lane-axis concat: two K=half MXU pushes.
    h = (jnp.dot(cos_a, w1c_ref[...].astype(jnp.float32),
                 preferred_element_type=jnp.float32)
         + jnp.dot(sin_a, w1s_ref[...].astype(jnp.float32),
                   preferred_element_type=jnp.float32)
         + b1_ref[...].astype(jnp.float32))
    h = h * jax.nn.sigmoid(h)                     # SiLU (f32)
    out = (jnp.dot(h, w2_ref[...].astype(jnp.float32),
                   preferred_element_type=jnp.float32)
           + b2_ref[...].astype(jnp.float32))
    out_ref[...] = out


def timestep_embedder(t, w1, b1, w2, b2, *, frequency_embedding_size=256,
                      max_period=10000, block_m=256):
    """t: (N,) float. w1:(256,H) b1:(H,) w2:(H,H) b2:(H,). Returns (N,H) f32.

    Linear weights are stored as (in_features, out_features), i.e. transposed
    w.r.t. PyTorch's (out, in), so the kernel computes x @ W + b.
    """
    n = t.shape[0]
    dim = frequency_embedding_size
    assert dim % 2 == 0, "odd frequency_embedding_size not supported"
    half = dim // 2
    hidden = w1.shape[1]

    hpad = _round_up(hidden, 128)                 # lane-dense output columns
    # Batch tile: fill MXU rows for large N; single 8-aligned block otherwise.
    tm = block_m if n >= block_m else max(8, _round_up(n, 8))
    n_pad = _round_up(n, tm)

    # Embedding-formula constants (plain JAX glue).
    freqs = jnp.exp(
        -math.log(max_period) * jnp.arange(half, dtype=jnp.float32) / half
    ).reshape(1, half)

    t2d = jnp.zeros((n_pad, 1), jnp.float32).at[:n, 0].set(
        t.astype(jnp.float32))

    def pad2(x, r, c):
        return jnp.zeros((r, c), x.dtype).at[:x.shape[0], :x.shape[1]].set(x)

    # Pad to lane-dense hidden size, cast weights/biases to bf16 (halves the
    # dominant weight DMA). Zero-padded columns/rows keep results exact.
    w1p = pad2(w1.astype(jnp.float32), dim, hpad).astype(jnp.bfloat16)
    w2p = pad2(w2.astype(jnp.float32), hpad, hpad).astype(jnp.bfloat16)
    b1p = pad2(b1.astype(jnp.float32).reshape(1, hidden), 1, hpad).astype(jnp.bfloat16)
    b2p = pad2(b2.astype(jnp.float32).reshape(1, hidden), 1, hpad).astype(jnp.bfloat16)
    w1c = w1p[:half]                              # rows hit by cos(args)
    w1s = w1p[half:]                              # rows hit by sin(args)

    grid = (n_pad // tm,)

    # VMEM budget: resident bf16 weights + double-buffered streamed blocks.
    vmem_bytes = int(
        2 * (tm * 1 + tm * hpad) * 4              # t / out blocks (x2 buffers)
        + half * 4                                # freqs
        + (dim * hpad + hpad * hpad + 2 * hpad) * 2   # bf16 weights + biases
    )
    vmem_limit = min(100 << 20, max(32 << 20, 2 * vmem_bytes + (4 << 20)))

    out = pl.pallas_call(
        _timestep_embedder_kernel,
        out_shape=jax.ShapeDtypeStruct((n_pad, hpad), jnp.float32),
        grid=grid,
        in_specs=[
            pl.BlockSpec((tm, 1), lambda i: (i, 0)),       # t (streamed)
            pl.BlockSpec((1, half), lambda i: (0, 0)),     # freqs (resident)
            pl.BlockSpec((half, hpad), lambda i: (0, 0)),  # W1 cos rows
            pl.BlockSpec((half, hpad), lambda i: (0, 0)),  # W1 sin rows
            pl.BlockSpec((1, hpad), lambda i: (0, 0)),     # b1
            pl.BlockSpec((hpad, hpad), lambda i: (0, 0)),  # W2
            pl.BlockSpec((1, hpad), lambda i: (0, 0)),     # b2
        ],
        out_specs=pl.BlockSpec((tm, hpad), lambda i: (i, 0)),
        compiler_params=pltpu.CompilerParams(
            dimension_semantics=("parallel",),             # v7x megacore
            vmem_limit_bytes=vmem_limit),
    )(t2d, freqs, w1c, w1s, b1p, w2p, b2p)
    # TODO(synk): for very large H, also tile W2 over output columns instead
    # of keeping the whole (Hp, Hp) tile resident (v7x has only 64 MiB VMEM).
    return out[:n, :hidden]


def _reference(t, w1, b1, w2, b2, frequency_embedding_size=256,
               max_period=10000):
    """Pure-JAX reference mirroring the PyTorch module (f32 everywhere)."""
    half = frequency_embedding_size // 2
    freqs = jnp.exp(
        -math.log(max_period) * jnp.arange(half, dtype=jnp.float32) / half)
    args = t.astype(jnp.float32)[:, None] * freqs[None]
    emb = jnp.concatenate([jnp.cos(args), jnp.sin(args)], axis=-1)
    h = emb @ w1 + b1
    h = h * jax.nn.sigmoid(h)
    return h @ w2 + b2


if __name__ == "__main__":
    hidden_size = 32
    freq_size = 256          # frequency_embedding_size (module default)
    n = 8                    # batch of timesteps

    key = jax.random.PRNGKey(0)
    k_t, k_w1, k_b1, k_w2, k_b2 = jax.random.split(key, 5)

    # Deterministic synthetic parameters (Linear weights stored as (in, out)).
    t = jax.random.uniform(k_t, (n,), jnp.float32, minval=0.0, maxval=1000.0)
    w1 = jax.random.normal(k_w1, (freq_size, hidden_size), jnp.float32) * 0.02
    b1 = jax.random.normal(k_b1, (hidden_size,), jnp.float32) * 0.02
    w2 = jax.random.normal(k_w2, (hidden_size, hidden_size), jnp.float32) * 0.02
    b2 = jax.random.normal(k_b2, (hidden_size,), jnp.float32) * 0.02

    out = timestep_embedder(t, w1, b1, w2, b2,
                            frequency_embedding_size=freq_size)
    out = jax.block_until_ready(out)
    assert out.shape == (n, hidden_size)

    # Tight check against a reference using the same bf16-rounded weights.
    def q(x):
        return x.astype(jnp.bfloat16).astype(jnp.float32)
    ref_q = _reference(t, q(w1), q(b1), q(w2), q(b2),
                       frequency_embedding_size=freq_size)
    assert jnp.allclose(out, ref_q, atol=3e-5, rtol=1e-4), \
        float(jnp.max(jnp.abs(out - ref_q)))

    # Loose sanity check against the full-f32 PyTorch-equivalent reference.
    ref_f32 = _reference(t, w1, b1, w2, b2, frequency_embedding_size=freq_size)
    assert jnp.allclose(out, ref_f32, atol=5e-3, rtol=5e-2), \
        float(jnp.max(jnp.abs(out - ref_f32)))

    print("KERNEL_OK")
</pallas_src>

<mosaic_0001>
module attributes {stable_mosaic.version = 11 : i64} {
  func.func @_timestep_embedder_kernel(%arg0: i32, %arg1: memref<8x1xf32, #tpu.memory_space<vmem>>, %arg2: memref<1x128xf32, #tpu.memory_space<vmem>>, %arg3: memref<128x128xbf16, #tpu.memory_space<vmem>>, %arg4: memref<128x128xbf16, #tpu.memory_space<vmem>>, %arg5: memref<1x128xbf16, #tpu.memory_space<vmem>>, %arg6: memref<128x128xbf16, #tpu.memory_space<vmem>>, %arg7: memref<1x128xbf16, #tpu.memory_space<vmem>>, %arg8: memref<8x128xf32, #tpu.memory_space<vmem>>) attributes {dimension_semantics = [#tpu.dimension_semantics<parallel>], iteration_bounds = array<i64: 1>, scalar_prefetch = 0 : i64, scratch_operands = 0 : i64, tpu.core_type = #tpu.core_type<tc>, window_params = [{transform_indices = @transform_0, window_bounds = array<i64: 8, 1>}, {pipeline_mode = #tpu.pipeline_mode<synchronous>, transform_indices = @transform_1, window_bounds = array<i64: 1, 128>}, {pipeline_mode = #tpu.pipeline_mode<synchronous>, transform_indices = @transform_2, window_bounds = array<i64: 128, 128>}, {pipeline_mode = #tpu.pipeline_mode<synchronous>, transform_indices = @transform_3, window_bounds = array<i64: 128, 128>}, {pipeline_mode = #tpu.pipeline_mode<synchronous>, transform_indices = @transform_4, window_bounds = array<i64: 1, 128>}, {pipeline_mode = #tpu.pipeline_mode<synchronous>, transform_indices = @transform_5, window_bounds = array<i64: 128, 128>}, {pipeline_mode = #tpu.pipeline_mode<synchronous>, transform_indices = @transform_6, window_bounds = array<i64: 1, 128>}, {transform_indices = @transform_7, window_bounds = array<i64: 8, 128>}]} {
    %c0 = arith.constant 0 : index
    %c0_0 = arith.constant 0 : index
    %0 = vector.load %arg1[%c0, %c0_0] : memref<8x1xf32, #tpu.memory_space<vmem>>, vector<8x1xf32>
    %c0_1 = arith.constant 0 : index
    %c0_2 = arith.constant 0 : index
    %1 = vector.load %arg2[%c0_1, %c0_2] : memref<1x128xf32, #tpu.memory_space<vmem>>, vector<1x128xf32>
    %2 = vector.broadcast %0 : vector<8x1xf32> to vector<8x128xf32>
    %3 = vector.broadcast %1 : vector<1x128xf32> to vector<8x128xf32>
    %4 = arith.mulf %2, %3 : vector<8x128xf32>
    %5 = math.cos %4 : vector<8x128xf32>
    %6 = math.sin %4 : vector<8x128xf32>
    %c0_3 = arith.constant 0 : index
    %c0_4 = arith.constant 0 : index
    %7 = vector.load %arg3[%c0_3, %c0_4] : memref<128x128xbf16, #tpu.memory_space<vmem>>, vector<128x128xbf16>
    %8 = arith.extf %7 : vector<128x128xbf16> to vector<128x128xf32>
    %cst = arith.constant dense<0.000000e+00> : vector<8x128xf32>
    %9 = tpu.matmul %5, %8, %cst {dimension_numbers = #tpu.dot_dimension_numbers<[1], [0], [0], [1], [0, 0, 1, 1], [], []>} : vector<8x128xf32>, vector<128x128xf32>, vector<8x128xf32> -> vector<8x128xf32>
    %c0_5 = arith.constant 0 : index
    %c0_6 = arith.constant 0 : index
    %10 = vector.load %arg4[%c0_5, %c0_6] : memref<128x128xbf16, #tpu.memory_space<vmem>>, vector<128x128xbf16>
    %11 = arith.extf %10 : vector<128x128xbf16> to vector<128x128xf32>
    %cst_7 = arith.constant dense<0.000000e+00> : vector<8x128xf32>
    %12 = tpu.matmul %6, %11, %cst_7 {dimension_numbers = #tpu.dot_dimension_numbers<[1], [0], [0], [1], [0, 0, 1, 1], [], []>} : vector<8x128xf32>, vector<128x128xf32>, vector<8x128xf32> -> vector<8x128xf32>
    %13 = arith.addf %9, %12 : vector<8x128xf32>
    %c0_8 = arith.constant 0 : index
    %c0_9 = arith.constant 0 : index
    %14 = vector.load %arg5[%c0_8, %c0_9] : memref<1x128xbf16, #tpu.memory_space<vmem>>, vector<1x128xbf16>
    %15 = arith.extf %14 : vector<1x128xbf16> to vector<1x128xf32>
    %16 = vector.broadcast %15 : vector<1x128xf32> to vector<8x128xf32>
    %17 = arith.addf %13, %16 : vector<8x128xf32>
    %18 = arith.negf %17 : vector<8x128xf32>
    %19 = math.exp %18 : vector<8x128xf32>
    %cst_10 = arith.constant 1.000000e+00 : f32
    %20 = vector.broadcast %cst_10 : f32 to vector<8x128xf32>
    %21 = arith.addf %20, %19 : vector<8x128xf32>
    %22 = arith.divf %20, %21 : vector<8x128xf32>
    %23 = arith.mulf %17, %22 : vector<8x128xf32>
    %c0_11 = arith.constant 0 : index
    %c0_12 = arith.constant 0 : index
    %24 = vector.load %arg6[%c0_11, %c0_12] : memref<128x128xbf16, #tpu.memory_space<vmem>>, vector<128x128xbf16>
    %25 = arith.extf %24 : vector<128x128xbf16> to vector<128x128xf32>
    %cst_13 = arith.constant dense<0.000000e+00> : vector<8x128xf32>
    %26 = tpu.matmul %23, %25, %cst_13 {dimension_numbers = #tpu.dot_dimension_numbers<[1], [0], [0], [1], [0, 0, 1, 1], [], []>} : vector<8x128xf32>, vector<128x128xf32>, vector<8x128xf32> -> vector<8x128xf32>
    %c0_14 = arith.constant 0 : index
    %c0_15 = arith.constant 0 : index
    %27 = vector.load %arg7[%c0_14, %c0_15] : memref<1x128xbf16, #tpu.memory_space<vmem>>, vector<1x128xbf16>
    %28 = arith.extf %27 : vector<1x128xbf16> to vector<1x128xf32>
    %29 = vector.broadcast %28 : vector<1x128xf32> to vector<8x128xf32>
    %30 = arith.addf %26, %29 : vector<8x128xf32>
    %c0_16 = arith.constant 0 : index
    %c0_17 = arith.constant 0 : index
    %31 = vector.load %arg8[%c0_16, %c0_17] : memref<8x128xf32, #tpu.memory_space<vmem>>, vector<8x128xf32>
    tpu.vector_store %arg8[%c0_16, %c0_17], %30 {strides = array<i32>} : memref<8x128xf32, #tpu.memory_space<vmem>>, vector<8x128xf32>,
    return
  }
  func.func @transform_0(%arg0: i32) -> (i32, i32) {
    %c0_i32 = arith.constant 0 : i32
    %c0_i32_0 = arith.constant 0 : i32
    return %arg0, %c0_i32 : i32, i32
  }
  func.func @transform_1(%arg0: i32) -> (i32, i32) {
    %c0_i32 = arith.constant 0 : i32
    %c0_i32_0 = arith.constant 0 : i32
    %c0_i32_1 = arith.constant 0 : i32
    return %c0_i32, %c0_i32_0 : i32, i32
  }
  func.func @transform_2(%arg0: i32) -> (i32, i32) {
    %c0_i32 = arith.constant 0 : i32
    %c0_i32_0 = arith.constant 0 : i32
    %c0_i32_1 = arith.constant 0 : i32
    return %c0_i32, %c0_i32_0 : i32, i32
  }
  func.func @transform_3(%arg0: i32) -> (i32, i32) {
    %c0_i32 = arith.constant 0 : i32
    %c0_i32_0 = arith.constant 0 : i32
    %c0_i32_1 = arith.constant 0 : i32
    return %c0_i32, %c0_i32_0 : i32, i32
  }
  func.func @transform_4(%arg0: i32) -> (i32, i32) {
    %c0_i32 = arith.constant 0 : i32
    %c0_i32_0 = arith.constant 0 : i32
    %c0_i32_1 = arith.constant 0 : i32
    return %c0_i32, %c0_i32_0 : i32, i32
  }
  func.func @transform_5(%arg0: i32) -> (i32, i32) {
    %c0_i32 = arith.constant 0 : i32
    %c0_i32_0 = arith.constant 0 : i32
    %c0_i32_1 = arith.constant 0 : i32
    return %c0_i32, %c0_i32_0 : i32, i32
  }
  func.func @transform_6(%arg0: i32) -> (i32, i32) {
    %c0_i32 = arith.constant 0 : i32
    %c0_i32_0 = arith.constant 0 : i32
    %c0_i32_1 = arith.constant 0 : i32
    return %c0_i32, %c0_i32_0 : i32, i32
  }
  func.func @transform_7(%arg0: i32) -> (i32, i32) {
    %c0_i32 = arith.constant 0 : i32
    %c0_i32_0 = arith.constant 0 : i32
    return %arg0, %c0_i32 : i32, i32
  }
}

</mosaic_0001>

<llo_original>
// kernel: tpu_custom_call.1
$region0: #{tpu_custom_call.1}
  #allocation0 [shape = 'u32[]', space=smem, size = 0x4, offset = 0x4, fixed_abs, tag = 'smem constant byte address 0x4 - core index']
  #allocation1 [shape = 'u32[72,128]{1,0:T(1,128)}', space=vmem, size = 0x9000, scoped, tag = 'internal scratch']
  %s0 = inlined_call_operand.vmem [shape: f32[8,1], index: 0, kind: input, shape index: {}]
  %s1 = inlined_call_operand.vmem [shape: f32[1,128], index: 1, kind: input, shape index: {}]
  %s2 = inlined_call_operand.hbm [shape: bf16[128,128], index: 2, kind: input, shape index: {}]
  %s3 = inlined_call_operand.hbm [shape: bf16[128,128], index: 3, kind: input, shape index: {}]
  %s4 = inlined_call_operand.vmem [shape: bf16[1,128], index: 4, kind: input, shape index: {}]
  %s5 = inlined_call_operand.hbm [shape: bf16[128,128], index: 5, kind: input, shape index: {}]
  %s6 = inlined_call_operand.vmem [shape: bf16[1,128], index: 6, kind: input, shape index: {}]
  %s7 = inlined_call_operand.hbm [shape: f32[8,128], index: 7, kind: output, shape index: {}]
  %s8 = sld [smem:[#allocation0]]
  $region50: #{tpu_custom_call.1} parent=0
    _
  %s10 = ssub.s32 1, %s8
  %s11 = scalar_select 0, %s10, %s8
  $region1: #{tpu_custom_call.1} parent=0
    #allocation2 [shape = 'u8[32768]{0}', space=vmem, size = 0x8000, scoped, tag = 'input window, operand 2, single buffered']
    #allocation3 [shape = 's32[1]{0}', space=sflag, size = 0x4, scoped, tag = 'scoped memory for tpu_custom_call.1']
    #allocation4 [shape = 's32[1]{0}', space=sflag, size = 0x4, scoped, tag = 'scoped memory for tpu_custom_call.1']
    #allocation5 [shape = 'u8[32768]{0}', space=vmem, size = 0x8000, scoped, tag = 'input window, operand 3, single buffered']
    #allocation6 [shape = 's32[1]{0}', space=sflag, size = 0x4, scoped, tag = 'scoped memory for tpu_custom_call.1']
    #allocation7 [shape = 'u8[32768]{0}', space=vmem, size = 0x8000, scoped, tag = 'input window, operand 5, single buffered']
    #allocation8 [shape = 'u8[4096]{0}', space=vmem, size = 0x1000, scoped, tag = 'output window, operand 0, single buffered']
    %12 = vsyncpa [#allocation3], 0
    %13 = vsyncpa [#allocation6], 0
    %14 = vsyncpa [#allocation4], 0
    // Predicated region
    $region2: #{tpu_custom_call.1} parent=1 // pred_check
      _
    $region3: #{tpu_custom_call.1} parent=1 // pred_check_branch
      %16 = sbr.rel (0) target = $region5
    $region4: #{tpu_custom_call.1} parent=1 // pred_region
      _
    $region5: #{tpu_custom_call.1} parent=1 // pred_fallthru
      _
    // Predicated region
    $region6: #{tpu_custom_call.1} parent=1 // pred_check
      _
    $region7: #{tpu_custom_call.1} parent=1 // pred_check_branch
      %18 = sbr.rel (0) target = $region9
    $region8: #{tpu_custom_call.1} parent=1 // pred_region
      _
    $region9: #{tpu_custom_call.1} parent=1 // pred_fallthru
      _
    // Predicated region
    $region10: #{tpu_custom_call.1} parent=1 // pred_check
      _
    $region11: #{tpu_custom_call.1} parent=1 // pred_check_branch
      %20 = sbr.rel (0) target = $region13
    $region12: #{tpu_custom_call.1} parent=1 // pred_region
      %22 = vsyncadd [#allocation3], 0
      %s23 = sshll.u32 %s2, 4
      %s24 = int_to_ptr.hbm [resolvable:$true] %s23
      %s25 = sshll.u32 [#allocation2], 4
      %s26 = int_to_ptr.vmem [resolvable:$true] %s25
      %31 = dma.hbm_to_vmem [thread:$0]  %s24, 1024, %s26, [#allocation3], 64, 64, 4
    $region13: #{tpu_custom_call.1} parent=1 // pred_fallthru
      _
    // Predicated region
    $region14: #{tpu_custom_call.1} parent=1 // pred_check
      _
    $region15: #{tpu_custom_call.1} parent=1 // pred_check_branch
      %33 = sbr.rel (0) target = $region17
    $region16: #{tpu_custom_call.1} parent=1 // pred_region
      %35 = vsyncadd [#allocation6], 0
      %s36 = sshll.u32 %s3, 4
      %s37 = int_to_ptr.hbm [resolvable:$true] %s36
      %s38 = sshll.u32 [#allocation5], 4
      %s39 = int_to_ptr.vmem [resolvable:$true] %s38
      %44 = dma.hbm_to_vmem [thread:$0]  %s37, 1024, %s39, [#allocation6], 64, 64, 4
    $region17: #{tpu_custom_call.1} parent=1 // pred_fallthru
      _
    // Predicated region
    $region18: #{tpu_custom_call.1} parent=1 // pred_check
      _
    $region19: #{tpu_custom_call.1} parent=1 // pred_check_branch
      %46 = sbr.rel (0) target = $region21
    $region20: #{tpu_custom_call.1} parent=1 // pred_region
      _
    $region21: #{tpu_custom_call.1} parent=1 // pred_fallthru
      _
    // Predicated region
    $region22: #{tpu_custom_call.1} parent=1 // pred_check
      _
    $region23: #{tpu_custom_call.1} parent=1 // pred_check_branch
      %48 = sbr.rel (0) target = $region25
    $region24: #{tpu_custom_call.1} parent=1 // pred_region
      %50 = vsyncadd [#allocation6], 0
      %s51 = sshll.u32 %s5, 4
      %s52 = int_to_ptr.hbm [resolvable:$true] %s51
      %s53 = sshll.u32 [#allocation7], 4
      %s54 = int_to_ptr.vmem [resolvable:$true] %s53
      %59 = dma.hbm_to_vmem [thread:$0]  %s52, 1024, %s54, [#allocation6], 64, 64, 4
    $region25: #{tpu_custom_call.1} parent=1 // pred_fallthru
      _
    // Predicated region
    $region26: #{tpu_custom_call.1} parent=1 // pred_check
      _
    $region27: #{tpu_custom_call.1} parent=1 // pred_check_branch
      %61 = sbr.rel (0) target = $region29
    $region28: #{tpu_custom_call.1} parent=1 // pred_region
      _
    $region29: #{tpu_custom_call.1} parent=1 // pred_fallthru
      _
    // Predicated region
    $region30: #{tpu_custom_call.1} parent=1 // pred_check
      _
    $region31: #{tpu_custom_call.1} parent=1 // pred_check_branch
      %63 = sbr.rel (0) target = $region33
    $region32: #{tpu_custom_call.1} parent=1 // pred_region
      %65 = dma.done [#allocation3], 1024
    $region33: #{tpu_custom_call.1} parent=1 // pred_fallthru
      _
    // Predicated region
    $region34: #{tpu_custom_call.1} parent=1 // pred_check
      _
    $region35: #{tpu_custom_call.1} parent=1 // pred_check_branch
      %67 = sbr.rel (0) target = $region37
    $region36: #{tpu_custom_call.1} parent=1 // pred_region
      %69 = dma.done [#allocation6], 1024
    $region37: #{tpu_custom_call.1} parent=1 // pred_fallthru
      _
    // Predicated region
    $region38: #{tpu_custom_call.1} parent=1 // pred_check
      _
    $region39: #{tpu_custom_call.1} parent=1 // pred_check_branch
      %71 = sbr.rel (0) target = $region41
    $region40: #{tpu_custom_call.1} parent=1 // pred_region
      %73 = dma.done [#allocation6], 1024
    $region41: #{tpu_custom_call.1} parent=1 // pred_fallthru
      _
    %v74 = vld [vmem:[%s0] sm:$0xff]
    %v75 = vld [vmem:[%s1] sm:$0x1]
    %77 = vset.pattern.permute.xlu0 0
    %78 = vperm.xlu0 %77, %v74
    %v79 = vpop.permute.xlu0 %78
    %v82 = vperm.slane %v75, 0
    %v84 = vmul.f32 %v79, %v82
    %v85 = vand.u32 2147483647, %v84
    %vm86 = vcmp.le.f32.partialorder %v85, 0.7853982
    %vm87 = vcmp.lt.s32.totalorder %v84, 0
    %v88 = vand.u32 %v84, 2139095040
    %v89 = vshrl.u32 %v88, 23
    %v90 = vsub.s32 %v89, 127
    %v91 = vand.u32 2147483647, %v84
    %v92 = vand.u32 %v91, 8388607
    %v93 = vor.u32 %v92, 8388608
    %v94 = vsub.s32 0, %v93
    %v95 = vadd.s32 %v90, 1
    %vm96 = vcmp.gt.s32.totalorder %v95, 0
    %v97 = vsel %vm96, %v95, 0
    %v98 = vshrl.u32 %v97, 5
    %v99 = vand.u32 %v97, 31
    %v100 = vsub.s32 32, %v99
    %v101 = vshrl.u32 683565275, %v100
    %v102 = vshll.u32 683565275, %v99
    %v103 = vshrl.u32 2475754826, %v100
    %v104 = vor.u32 %v102, %v103
    %v105 = vshll.u32 2475754826, %v99
    %v106 = vshrl.u32 2131351028, %v100
    %v107 = vor.u32 %v105, %v106
    %v108 = vshll.u32 2131351028, %v99
    %v109 = vshrl.u32 2102212464, %v100
    %v110 = vor.u32 %v108, %v109
    %v111 = vshll.u32 2102212464, %v99
    %v112 = vshrl.u32 920167782, %v100
    %v113 = vor.u32 %v111, %v112
    %v114 = vshll.u32 920167782, %v99
    %v115 = vshrl.u32 1326507024, %v100
    %v116 = vor.u32 %v114, %v115
    %vm117 = vcmp.lt.s32.totalorder %v98, 1
    %vm118 = vcmp.lt.s32.totalorder %v98, 2
    %vm119 = vcmp.lt.s32.totalorder %v98, 3
    %vm120 = vcmp.lt.s32.totalorder %v98, 4
    %v121 = vsel %vm117, %v101, %v104
    %v122 = vsel %vm120, %v110, 2102212464
    %v123 = vsel %vm119, %v107, %v122
    %v124 = vsel %vm118, %v121, %v123
    %v125 = vsel %vm117, %v104, %v107
    %v126 = vsel %vm120, %v113, 920167782
    %v127 = vsel %vm119, %v110, %v126
    %v128 = vsel %vm118, %v125, %v127
    %v129 = vsel %vm117, %v107, %v110
    %v130 = vsel %vm120, %v116, 1326507024
    %v131 = vsel %vm119, %v113, %v130
    %v132 = vsel %vm118, %v129, %v131
    %v133 = vshll.u32 %v93, 8
    %v134 = vand.u32 %v133, 65535
    %v135 = vshrl.u32 %v133, 16
    %v136 = vand.u32 %v132, 65535
    %v137 = vshrl.u32 %v132, 16
    %v138 = vmul.u32 %v134, %v136
    %v139 = vmul.u32 %v134, %v137
    %v140 = vmul.u32 %v135, %v136
    %v141 = vmul.u32 %v135, %v137
    %v142 = vshll.u32 %v139, 16
    %v143 = vshrl.u32 %v139, 16
    %v144 = vshll.u32 %v140, 16
    %v145 = vshrl.u32 %v140, 16
    %vm146 = vc.u32 %v138, %v142
    %v147 = vsel %vm146, 1, 0
    %v148 = vadd.s32 %v138, %v142
    %v149 = vadd.s32 %v141, %v147
    %vm150 = vc.u32 %v148, %v144
    %v151 = vsel %vm150, 1, 0
    %v152 = vadd.s32 %v148, %v144
    %v153 = vadd.s32 %v149, %v151
    %v154 = vadd.s32 %v153, %v143
    %v155 = vadd.s32 %v154, %v145
    %v156 = vand.u32 %v133, 65535
    %v157 = vshrl.u32 %v133, 16
    %v158 = vand.u32 %v128, 65535
    %v159 = vshrl.u32 %v128, 16
    %v160 = vmul.u32 %v156, %v158
    %v161 = vmul.u32 %v156, %v159
    %v162 = vmul.u32 %v157, %v158
    %v163 = vmul.u32 %v157, %v159
    %v164 = vshll.u32 %v161, 16
    %v165 = vshrl.u32 %v161, 16
    %v166 = vshll.u32 %v162, 16
    %v167 = vshrl.u32 %v162, 16
    %vm168 = vc.u32 %v160, %v164
    %v169 = vsel %vm168, 1, 0
    %v170 = vadd.s32 %v160, %v164
    %v171 = vadd.s32 %v163, %v169
    %vm172 = vc.u32 %v170, %v166
    %v173 = vsel %vm172, 1, 0
    %v174 = vadd.s32 %v170, %v166
    %v175 = vadd.s32 %v171, %v173
    %v176 = vadd.s32 %v175, %v165
    %v177 = vadd.s32 %v176, %v167
    %v178 = vmul.u32 %v133, %v124
    %v179 = vadd.s32 %v155, %v174
    %vm180 = vc.u32 %v155, %v174
    %v181 = vadd.s32 %v177, 1
    %v182 = vsel %vm180, %v181, %v177
    %v183 = vadd.s32 %v178, %v182
    %v184 = vadd.s32 %v183, 536870912
    %v185 = vshrl.u32 %v184, 30
    %v186 = vshll.u32 %v185, 30
    %v187 = vsub.s32 %v183, %v186
    %vm188 = vcmp.lt.s32.totalorder %v187, 0
    %v189 = vsub.s32 0, %v187
    %v190 = vsel %vm188, %v189, %v187
    %v191 = vclz %v190
    %v192 = vsub.s32 %v191, 2
    %vm193 = vcmp.gt.s32.totalorder 0, %v192
    %v194 = vsel %vm193, 0, %v192
    %v195 = vsub.s32 32, %v194
    %v196 = vshll.u32 %v187, %v194
    %v197 = vshrl.u32 %v179, %v195
    %v198 = vor.u32 %v196, %v197
    %v199 = vsub.s32 4294967266, %v194
    %v200 = vadd.s32 %v199, 127
    %v201 = vshll.u32 %v200, 23
    %v202 = vor.u32 4788187, %v201
    %v203 = vand.u32 2147483647, %v202
    %v205 = vcvt.s32.f32 %v198
    %v206 = vmul.f32 %v205, %v203
    %v207 = vxor.u32 %v206, 2147483648
    %v208 = vsel %vm87, %v207, %v206
    %v209 = vsub.s32 4, %v185
    %v210 = vsel %vm87, %v209, %v185
    %v211 = vsel %vm86, %v84, %v208
    %v212 = vsel %vm86, 0, %v210
    %v213 = vmul.f32 %v211, %v211
    %v214 = vmul.f32 %v213, -0.001358992
    %v215 = vadd.f32 %v214, 0.041655596
    %v216 = vmul.f32 %v213, %v215
    %v217 = vadd.f32 %v216, -0.4999988
    %v218 = vmul.f32 %v213, %v217
    %v219 = vadd.f32 1.0, %v218
    %v220 = vmul.f32 %v211, %v211
    %v221 = vmul.f32 %v220, -0.00019511016
    %v222 = vadd.f32 %v221, 0.008332121
    %v223 = vmul.f32 %v220, %v222
    %v224 = vadd.f32 %v223, -0.16666654
    %v225 = vmul.f32 %v220, %v224
    %v226 = vadd.f32 %v225, 1.0
    %v227 = vmul.f32 %v226, %v211
    %vm228 = vweird.f32 %v84
    %v229 = vand.u32 %v212, 3
    %vm230 = vcmp.lt.s32.totalorder %v229, 2
    %vm231 = vcmp.eq.s32.totalorder %v229, 0
    %v232 = vxor.u32 %v227, 2147483648
    %v233 = vsel %vm231, %v219, %v232
    %vm234 = vcmp.eq.s32.totalorder %v229, 2
    %v235 = vxor.u32 %v219, 2147483648
    %v236 = vsel %vm234, %v235, %v227
    %v237 = vsel %vm230, %v233, %v236
    %v238 = vsel %vm228, nan, %v237
    %v239 = vand.u32 2147483647, %v84
    %vm240 = vcmp.le.f32.partialorder %v239, 0.7853982
    %vm241 = vcmp.lt.s32.totalorder %v84, 0
    %v242 = vand.u32 %v84, 2139095040
    %v243 = vshrl.u32 %v242, 23
    %v244 = vsub.s32 %v243, 127
    %v245 = vand.u32 2147483647, %v84
    %v246 = vand.u32 %v245, 8388607
    %v247 = vor.u32 %v246, 8388608
    %v248 = vsub.s32 0, %v247
    %v249 = vadd.s32 %v244, 1
    %vm250 = vcmp.gt.s32.totalorder %v249, 0
    %v251 = vsel %vm250, %v249, 0
    %v252 = vshrl.u32 %v251, 5
    %v253 = vand.u32 %v251, 31
    %v254 = vsub.s32 32, %v253
    %v255 = vshrl.u32 683565275, %v254
    %v256 = vshll.u32 683565275, %v253
    %v257 = vshrl.u32 2475754826, %v254
    %v258 = vor.u32 %v256, %v257
    %v259 = vshll.u32 2475754826, %v253
    %v260 = vshrl.u32 2131351028, %v254
    %v261 = vor.u32 %v259, %v260
    %v262 = vshll.u32 2131351028, %v253
    %v263 = vshrl.u32 2102212464, %v254
    %v264 = vor.u32 %v262, %v263
    %v265 = vshll.u32 2102212464, %v253
    %v266 = vshrl.u32 920167782, %v254
    %v267 = vor.u32 %v265, %v266
    %v268 = vshll.u32 920167782, %v253
    %v269 = vshrl.u32 1326507024, %v254
    %v270 = vor.u32 %v268, %v269
    %vm271 = vcmp.lt.s32.totalorder %v252, 1
    %vm272 = vcmp.lt.s32.totalorder %v252, 2
    %vm273 = vcmp.lt.s32.totalorder %v252, 3
    %vm274 = vcmp.lt.s32.totalorder %v252, 4
    %v275 = vsel %vm271, %v255, %v258
    %v276 = vsel %vm274, %v264, 2102212464
    %v277 = vsel %vm273, %v261, %v276
    %v278 = vsel %vm272, %v275, %v277
    %v279 = vsel %vm271, %v258, %v261
    %v280 = vsel %vm274, %v267, 920167782
    %v281 = vsel %vm273, %v264, %v280
    %v282 = vsel %vm272, %v279, %v281
    %v283 = vsel %vm271, %v261, %v264
    %v284 = vsel %vm274, %v270, 1326507024
    %v285 = vsel %vm273, %v267, %v284
    %v286 = vsel %vm272, %v283, %v285
    %v287 = vshll.u32 %v247, 8
    %v288 = vand.u32 %v287, 65535
    %v289 = vshrl.u32 %v287, 16
    %v290 = vand.u32 %v286, 65535
    %v291 = vshrl.u32 %v286, 16
    %v292 = vmul.u32 %v288, %v290
    %v293 = vmul.u32 %v288, %v291
    %v294 = vmul.u32 %v289, %v290
    %v295 = vmul.u32 %v289, %v291
    %v296 = vshll.u32 %v293, 16
    %v297 = vshrl.u32 %v293, 16
    %v298 = vshll.u32 %v294, 16
    %v299 = vshrl.u32 %v294, 16
    %vm300 = vc.u32 %v292, %v296
    %v301 = vsel %vm300, 1, 0
    %v302 = vadd.s32 %v292, %v296
    %v303 = vadd.s32 %v295, %v301
    %vm304 = vc.u32 %v302, %v298
    %v305 = vsel %vm304, 1, 0
    %v306 = vadd.s32 %v302, %v298
    %v307 = vadd.s32 %v303, %v305
    %v308 = vadd.s32 %v307, %v297
    %v309 = vadd.s32 %v308, %v299
    %v310 = vand.u32 %v287, 65535
    %v311 = vshrl.u32 %v287, 16
    %v312 = vand.u32 %v282, 65535
    %v313 = vshrl.u32 %v282, 16
    %v314 = vmul.u32 %v310, %v312
    %v315 = vmul.u32 %v310, %v313
    %v316 = vmul.u32 %v311, %v312
    %v317 = vmul.u32 %v311, %v313
    %v318 = vshll.u32 %v315, 16
    %v319 = vshrl.u32 %v315, 16
    %v320 = vshll.u32 %v316, 16
    %v321 = vshrl.u32 %v316, 16
    %vm322 = vc.u32 %v314, %v318
    %v323 = vsel %vm322, 1, 0
    %v324 = vadd.s32 %v314, %v318
    %v325 = vadd.s32 %v317, %v323
    %vm326 = vc.u32 %v324, %v320
    %v327 = vsel %vm326, 1, 0
    %v328 = vadd.s32 %v324, %v320
    %v329 = vadd.s32 %v325, %v327
    %v330 = vadd.s32 %v329, %v319
    %v331 = vadd.s32 %v330, %v321
    %v332 = vmul.u32 %v287, %v278
    %v333 = vadd.s32 %v309, %v328
    %vm334 = vc.u32 %v309, %v328
    %v335 = vadd.s32 %v331, 1
    %v336 = vsel %vm334, %v335, %v331
    %v337 = vadd.s32 %v332, %v336
    %v338 = vadd.s32 %v337, 536870912
    %v339 = vshrl.u32 %v338, 30
    %v340 = vshll.u32 %v339, 30
    %v341 = vsub.s32 %v337, %v340
    %vm342 = vcmp.lt.s32.totalorder %v341, 0
    %v343 = vsub.s32 0, %v341
    %v344 = vsel %vm342, %v343, %v341
    %v345 = vclz %v344
    %v346 = vsub.s32 %v345, 2
    %vm347 = vcmp.gt.s32.totalorder 0, %v346
    %v348 = vsel %vm347, 0, %v346
    %v349 = vsub.s32 32, %v348
    %v350 = vshll.u32 %v341, %v348
    %v351 = vshrl.u32 %v333, %v349
    %v352 = vor.u32 %v350, %v351
    %v353 = vsub.s32 4294967266, %v348
    %v354 = vadd.s32 %v353, 127
    %v355 = vshll.u32 %v354, 23
    %v356 = vor.u32 4788187, %v355
    %v357 = vand.u32 2147483647, %v356
    %v359 = vcvt.s32.f32 %v352
    %v360 = vmul.f32 %v359, %v357
    %v361 = vxor.u32 %v360, 2147483648
    %v362 = vsel %vm241, %v361, %v360
    %v363 = vsub.s32 4, %v339
    %v364 = vsel %vm241, %v363, %v339
    %v365 = vsel %vm240, %v84, %v362
    %v366 = vsel %vm240, 0, %v364
    %v367 = vmul.f32 %v365, %v365
    %v368 = vmul.f32 %v367, -0.001358992
    %v369 = vadd.f32 %v368, 0.041655596
    %v370 = vmul.f32 %v367, %v369
    %v371 = vadd.f32 %v370, -0.4999988
    %v372 = vmul.f32 %v367, %v371
    %v373 = vadd.f32 1.0, %v372
    %v374 = vmul.f32 %v365, %v365
    %v375 = vmul.f32 %v374, -0.00019511016
    %v376 = vadd.f32 %v375, 0.008332121
    %v377 = vmul.f32 %v374, %v376
    %v378 = vadd.f32 %v377, -0.16666654
    %v379 = vmul.f32 %v374, %v378
    %v380 = vadd.f32 %v379, 1.0
    %v381 = vmul.f32 %v380, %v365
    %vm382 = vweird.f32 %v84
    %v383 = vadd.s32 %v366, 3
    %v384 = vand.u32 %v383, 3
    %vm385 = vcmp.lt.s32.totalorder %v384, 2
    %vm386 = vcmp.eq.s32.totalorder %v384, 0
    %v387 = vxor.u32 %v381, 2147483648
    %v388 = vsel %vm386, %v373, %v387
    %vm389 = vcmp.eq.s32.totalorder %v384, 2
    %v390 = vxor.u32 %v373, 2147483648
    %v391 = vsel %vm389, %v390, %v381
    %v392 = vsel %vm385, %v388, %v391
    %v393 = vsel %vm382, nan, %v392
    %v394 = vld [vmem:[#allocation2] sm:$0xf]
    %v395 = vld [vmem:[#allocation2 + $0x4] sm:$0xf]
    %v396 = vld [vmem:[#allocation2 + $0x8] sm:$0xf]
    %v397 = vld [vmem:[#allocation2 + $0xc] sm:$0xf]
    %v398 = vld [vmem:[#allocation2 + $0x10] sm:$0xf]
    %v399 = vld [vmem:[#allocation2 + $0x14] sm:$0xf]
    %v400 = vld [vmem:[#allocation2 + $0x18] sm:$0xf]
    %v401 = vld [vmem:[#allocation2 + $0x1c] sm:$0xf]
    %v402 = vld [vmem:[#allocation2 + $0x20] sm:$0xf]
    %v403 = vld [vmem:[#allocation2 + $0x24] sm:$0xf]
    %v404 = vld [vmem:[#allocation2 + $0x28] sm:$0xf]
    %v405 = vld [vmem:[#allocation2 + $0x2c] sm:$0xf]
    %v406 = vld [vmem:[#allocation2 + $0x30] sm:$0xf]
    %v407 = vld [vmem:[#allocation2 + $0x34] sm:$0xf]
    %v408 = vld [vmem:[#allocation2 + $0x38] sm:$0xf]
    %v409 = vld [vmem:[#allocation2 + $0x3c] sm:$0xf]
    %v410 = vunpack.c.l.bf16 %v394
    %v411 = vunpack.c.l.bf16 %v395
    %v412 = vunpack.c.l.bf16 %v396
    %v413 = vunpack.c.l.bf16 %v397
    %v414 = vunpack.c.l.bf16 %v398
    %v415 = vunpack.c.l.bf16 %v399
    %v416 = vunpack.c.l.bf16 %v400
    %v417 = vunpack.c.l.bf16 %v401
    %v418 = vunpack.c.l.bf16 %v402
    %v419 = vunpack.c.l.bf16 %v403
    %v420 = vunpack.c.l.bf16 %v404
    %v421 = vunpack.c.l.bf16 %v405
    %v422 = vunpack.c.l.bf16 %v406
    %v423 = vunpack.c.l.bf16 %v407
    %v424 = vunpack.c.l.bf16 %v408
    %v425 = vunpack.c.l.bf16 %v409
    %v426 = vld [vmem:[#allocation5] sm:$0xf]
    %v427 = vld [vmem:[#allocation5 + $0x4] sm:$0xf]
    %v428 = vld [vmem:[#allocation5 + $0x8] sm:$0xf]
    %v429 = vld [vmem:[#allocation5 + $0xc] sm:$0xf]
    %v430 = vld [vmem:[#allocation5 + $0x10] sm:$0xf]
    %v431 = vld [vmem:[#allocation5 + $0x14] sm:$0xf]
    %v432 = vld [vmem:[#allocation5 + $0x18] sm:$0xf]
    %v433 = vld [vmem:[#allocation5 + $0x1c] sm:$0xf]
    %v434 = vld [vmem:[#allocation5 + $0x20] sm:$0xf]
    %v435 = vld [vmem:[#allocation5 + $0x24] sm:$0xf]
    %v436 = vld [vmem:[#allocation5 + $0x28] sm:$0xf]
    %v437 = vld [vmem:[#allocation5 + $0x2c] sm:$0xf]
    %v438 = vld [vmem:[#allocation5 + $0x30] sm:$0xf]
    %v439 = vld [vmem:[#allocation5 + $0x34] sm:$0xf]
    %v440 = vld [vmem:[#allocation5 + $0x38] sm:$0xf]
    %v441 = vld [vmem:[#allocation5 + $0x3c] sm:$0xf]
    %v442 = vunpack.c.l.bf16 %v426
    %v443 = vunpack.c.l.bf16 %v427
    %v444 = vunpack.c.l.bf16 %v428
    %v445 = vunpack.c.l.bf16 %v429
    %v446 = vunpack.c.l.bf16 %v430
    %v447 = vunpack.c.l.bf16 %v431
    %v448 = vunpack.c.l.bf16 %v432
    %v449 = vunpack.c.l.bf16 %v433
    %v450 = vunpack.c.l.bf16 %v434
    %v451 = vunpack.c.l.bf16 %v435
    %v452 = vunpack.c.l.bf16 %v436
    %v453 = vunpack.c.l.bf16 %v437
    %v454 = vunpack.c.l.bf16 %v438
    %v455 = vunpack.c.l.bf16 %v439
    %v456 = vunpack.c.l.bf16 %v440
    %v457 = vunpack.c.l.bf16 %v441
    %458 = vmatpush.msra.mxu0 %v457
    %459 = vmatpush.msra.mxu0 %v456
    %460 = vmatpush.msra.mxu0 %v455
    %461 = vmatpush.msra.mxu0 %v454
    %462 = vmatpush.msra.mxu0 %v453
    %463 = vmatpush.msra.mxu0 %v452
    %464 = vmatpush.msra.mxu0 %v451
    %465 = vmatpush.msra.mxu0 %v450
    %466 = vmatpush.msra.mxu0 %v449
    %467 = vmatpush.msra.mxu0 %v448
    %468 = vmatpush.msra.mxu0 %v447
    %469 = vmatpush.msra.mxu0 %v446
    %470 = vmatpush.msra.mxu0 %v445
    %471 = vmatpush.msra.mxu0 %v444
    %472 = vmatpush.msra.mxu0 %v443
    %473 = vmatpush.msra.mxu0 %v442
    %474 = vmatmul.f32.gmra.mxu0 %v393
    %v475 = vpop.f32.mrf.mxu0
    %v476 = vadd.f32 0.0, %v475
    %477 = vdwg.mxu0
    %478 = vmatpush.msra.mxu0 %v425
    %479 = vmatpush.msra.mxu0 %v424
    %480 = vmatpush.msra.mxu0 %v423
    %481 = vmatpush.msra.mxu0 %v422
    %482 = vmatpush.msra.mxu0 %v421
    %483 = vmatpush.msra.mxu0 %v420
    %484 = vmatpush.msra.mxu0 %v419
    %485 = vmatpush.msra.mxu0 %v418
    %486 = vmatpush.msra.mxu0 %v417
    %487 = vmatpush.msra.mxu0 %v416
    %488 = vmatpush.msra.mxu0 %v415
    %489 = vmatpush.msra.mxu0 %v414
    %490 = vmatpush.msra.mxu0 %v413
    %491 = vmatpush.msra.mxu0 %v412
    %492 = vmatpush.msra.mxu0 %v411
    %493 = vmatpush.msra.mxu0 %v410
    %494 = vmatmul.f32.gmra.mxu0 %v238
    %v495 = vpop.f32.mrf.mxu0
    %v496 = vadd.f32 %v476, %v495
    %497 = vdwg.mxu0
    %v498 = vld [vmem:[%s4] sm:$0x1]
    %v499 = vunpack.c.l.bf16 %v498
    %v500 = vperm.slane %v499, 0
    %v501 = vadd.f32 %v496, %v500
    %v502 = vxor.u32 %v501, 2147483648
    %v503 = vmul.f32 %v502, 1.442695
    %v504 = vpow.pop %v503
    %v505 = vadd.f32 %v504, 1.0
    %v506 = vrcp.pop %v505
    %v507 = vmul.f32 %v505, %v506
    %v508 = vsub.f32 1.0, %v507
    %v509 = vmul.f32 %v506, %v508
    %v510 = vadd.f32 %v506, %v509
    %vm511 = vweird.f32 %v505
    %vm512 = vweird.f32 %v506
    %vm513 = vmor %vm511, %vm512
    %v514 = vsel %vm513, %v506, %v510
    %v515 = vand.u32 2147483647, %v505
    %vm516 = vcmp.eq.f32.partialorder %v515, 8.507059e+37
    %v517 = vand.u32 %v505, 2147483648
    %v518 = vor.u32 1.1754944e-38, %v517
    %v519 = vsel %vm516, %v518, %v514
    %v520 = vmul.f32 1.0, %v519
    %v521 = vmul.f32 %v501, %v520
    %v522 = vld [vmem:[#allocation7] sm:$0xf]
    %v523 = vld [vmem:[#allocation7 + $0x4] sm:$0xf]
    %v524 = vld [vmem:[#allocation7 + $0x8] sm:$0xf]
    %v525 = vld [vmem:[#allocation7 + $0xc] sm:$0xf]
    %v526 = vld [vmem:[#allocation7 + $0x10] sm:$0xf]
    %v527 = vld [vmem:[#allocation7 + $0x14] sm:$0xf]
    %v528 = vld [vmem:[#allocation7 + $0x18] sm:$0xf]
    %v529 = vld [vmem:[#allocation7 + $0x1c] sm:$0xf]
    %v530 = vld [vmem:[#allocation7 + $0x20] sm:$0xf]
    %v531 = vld [vmem:[#allocation7 + $0x24] sm:$0xf]
    %v532 = vld [vmem:[#allocation7 + $0x28] sm:$0xf]
    %v533 = vld [vmem:[#allocation7 + $0x2c] sm:$0xf]
    %v534 = vld [vmem:[#allocation7 + $0x30] sm:$0xf]
    %v535 = vld [vmem:[#allocation7 + $0x34] sm:$0xf]
    %v536 = vld [vmem:[#allocation7 + $0x38] sm:$0xf]
    %v537 = vld [vmem:[#allocation7 + $0x3c] sm:$0xf]
    %v538 = vunpack.c.l.bf16 %v522
    %v539 = vunpack.c.l.bf16 %v523
    %v540 = vunpack.c.l.bf16 %v524
    %v541 = vunpack.c.l.bf16 %v525
    %v542 = vunpack.c.l.bf16 %v526
    %v543 = vunpack.c.l.bf16 %v527
    %v544 = vunpack.c.l.bf16 %v528
    %v545 = vunpack.c.l.bf16 %v529
    %v546 = vunpack.c.l.bf16 %v530
    %v547 = vunpack.c.l.bf16 %v531
    %v548 = vunpack.c.l.bf16 %v532
    %v549 = vunpack.c.l.bf16 %v533
    %v550 = vunpack.c.l.bf16 %v534
    %v551 = vunpack.c.l.bf16 %v535
    %v552 = vunpack.c.l.bf16 %v536
    %v553 = vunpack.c.l.bf16 %v537
    %v554 = vld [vmem:[%s6] sm:$0x1]
    %v555 = vunpack.c.l.bf16 %v554
    %v556 = vperm.slane %v555, 0
    %557 = vmatpush.msra.mxu0 %v553
    %558 = vmatpush.msra.mxu0 %v552
    %559 = vmatpush.msra.mxu0 %v551
    %560 = vmatpush.msra.mxu0 %v550
    %561 = vmatpush.msra.mxu0 %v549
    %562 = vmatpush.msra.mxu0 %v548
    %563 = vmatpush.msra.mxu0 %v547
    %564 = vmatpush.msra.mxu0 %v546
    %565 = vmatpush.msra.mxu0 %v545
    %566 = vmatpush.msra.mxu0 %v544
    %567 = vmatpush.msra.mxu0 %v543
    %568 = vmatpush.msra.mxu0 %v542
    %569 = vmatpush.msra.mxu0 %v541
    %570 = vmatpush.msra.mxu0 %v540
    %571 = vmatpush.msra.mxu0 %v539
    %572 = vmatpush.msra.mxu0 %v538
    %573 = vmatmul.f32.gmra.mxu0 %v521
    %v574 = vpop.f32.mrf.mxu0
    %v575 = vadd.f32 %v556, %v574
    %576 = vdwg.mxu0
    %577 = vst [vmem:[#allocation8] sm:$0xff] %v575
    // Predicated region
    $region42: #{tpu_custom_call.1} parent=1 // pred_check
      _
    $region43: #{tpu_custom_call.1} parent=1 // pred_check_branch
      %579 = sbr.rel (0) target = $region45
    $region44: #{tpu_custom_call.1} parent=1 // pred_region
      %581 = vsyncadd [#allocation4], 0
      %s583 = sshll.u32 [#allocation8], 4
      %s584 = int_to_ptr.vmem [resolvable:$true] %s583
      %s585 = sshll.u32 %s7, 4
      %s586 = int_to_ptr.hbm [resolvable:$true] %s585
      %588 = dma.vmem_to_hbm [thread:$0]  %s584, 128, %s586, [#allocation4]
    $region45: #{tpu_custom_call.1} parent=1 // pred_fallthru
      _
    // Predicated region
    $region46: #{tpu_custom_call.1} parent=1 // pred_check
      _
    $region47: #{tpu_custom_call.1} parent=1 // pred_check_branch
      %590 = sbr.rel (0) target = $region49
    $region48: #{tpu_custom_call.1} parent=1 // pred_region
      %592 = dma.done [#allocation4], 128
    $region49: #{tpu_custom_call.1} parent=1 // pred_fallthru
      _
    %593 = vsyncpa [#allocation3], 1
    %594 = vsyncpa [#allocation6], 1
    %595 = vsyncpa [#allocation4], 1

</llo_original>
